<compile_context>
chip_gen: v5e
topology: v5e:2x2
jax: 0.10.0
libtpu: 0.0.40
codegen_flags: <defaults>
</compile_context>

<pallas_src>
import jax
import jax.numpy as jnp
from jax.experimental import pallas as pl
from jax.experimental.pallas import tpu as pltpu


def _softplus(x):
    # Numerically stable softplus: log(1 + e^x) = max(x, 0) + log1p(e^{-|x|})
    # (matches torch.nn.functional.softplus with beta=1).
    return jnp.maximum(x, 0.0) + jnp.log1p(jnp.exp(-jnp.abs(x)))


def edl_forward_kernel(x_ref, w1t_ref, b1_ref, w2t_ref, b2_ref, o_ref):
    """Fused hot path: pixelwise MLP (two MXU matmuls + ReLU) + softplus evidence.

    Spatial dim is the lane (last) dim of every streamed tile.

    x_ref  : (C_in, tile_s)          VMEM   (streamed)
    w1t_ref: (hidden, C_in)          VMEM   (resident)
    b1_ref : (hidden, 1)             VMEM   (resident)
    w2t_ref: (num_classes, hidden)   VMEM   (resident)
    b2_ref : (num_classes, 1)        VMEM   (resident)
    o_ref  : (num_classes, tile_s)   VMEM   (streamed, lane-dense stores)
    """
    h = jnp.dot(w1t_ref[...], x_ref[...], preferred_element_type=jnp.float32)
    h = jnp.maximum(h + b1_ref[...], 0.0)
    logits = jnp.dot(w2t_ref[...], h, preferred_element_type=jnp.float32) + b2_ref[...]
    o_ref[...] = _softplus(logits).astype(o_ref.dtype)


def edl_classifier_forward(x_nchw, params, *, tile_spatial=2048):
    """EDLClassifier.forward: x (N, C, H, W) -> evidence (N, num_classes, H, W)."""
    assert tile_spatial % 128 == 0, "tile_spatial must be a multiple of 128 lanes"
    w1, b1, w2, b2 = params
    n, c, h, w = x_nchw.shape
    hidden = w1.shape[1]
    num_classes = w2.shape[1]
    s = h * w

    # Channels-kept layout: (N, C, S) is a pure reshape of NCHW (no transpose).
    x_ncs = x_nchw.reshape(n, c, s)

    # Lane-aligned spatial tiling; pad the tail instead of asserting divisibility.
    s_lane = ((s + 127) // 128) * 128           # round up to lane multiple
    tile_s = min(tile_spatial, s_lane)          # multiple of 128
    s_pad = pl.cdiv(s, tile_s) * tile_s
    if s_pad != s:
        x_ncs = jnp.pad(x_ncs, ((0, 0), (0, 0), (0, s_pad - s)))

    # Tiny weight reorientation (negligible): channel dims become sublane dims.
    w1t = jnp.transpose(w1)                     # (hidden, C)
    b1c = b1.reshape(hidden, 1)                 # (hidden, 1)
    w2t = jnp.transpose(w2)                     # (num_classes, hidden)
    b2c = b2.reshape(num_classes, 1)            # (num_classes, 1)

    grid = (n, s_pad // tile_s)

    # Advisory cost estimate for the XLA scheduler (op is HBM-bandwidth bound).
    flops = 2 * n * s * (c * hidden + hidden * num_classes)
    bytes_accessed = 4 * (n * s_pad * (c + num_classes)
                          + c * hidden + hidden + hidden * num_classes + num_classes)
    cost = pl.CostEstimate(flops=flops,
                           transcendentals=2 * n * s * num_classes,
                           bytes_accessed=bytes_accessed)

    out = pl.pallas_call(
        edl_forward_kernel,
        out_shape=jax.ShapeDtypeStruct((n, num_classes, s_pad), jnp.float32),
        grid_spec=pltpu.PrefetchScalarGridSpec(
            num_scalar_prefetch=0,
            grid=grid,
            in_specs=[
                pl.BlockSpec((None, c, tile_s), lambda b, si: (b, 0, si)),
                pl.BlockSpec((hidden, c), lambda b, si: (0, 0)),
                pl.BlockSpec((hidden, 1), lambda b, si: (0, 0)),
                pl.BlockSpec((num_classes, hidden), lambda b, si: (0, 0)),
                pl.BlockSpec((num_classes, 1), lambda b, si: (0, 0)),
            ],
            out_specs=pl.BlockSpec((None, num_classes, tile_s),
                                   lambda b, si: (b, 0, si)),
        ),
        compiler_params=pltpu.CompilerParams(
            dimension_semantics=("parallel", "parallel"),
            vmem_limit_bytes=32 * 1024 * 1024,
        ),
        cost_estimate=cost,
    )(x_ncs, w1t, b1c, w2t, b2c)

    # Drop spatial padding (no-op when S already lane aligned) and reshape to NCHW.
    evidence = out[:, :, :s].reshape(n, num_classes, h, w)
    # logits spatial size == x spatial size here, so no nearest interpolation needed
    # (the reference only interpolates on mismatch).
    return evidence


def _reference_forward(x_nchw, params):
    """Pure-JAX reference for correctness checking."""
    w1, b1, w2, b2 = params
    n, c, h, w = x_nchw.shape
    x_rows = jnp.transpose(x_nchw, (0, 2, 3, 1)).reshape(n * h * w, c)
    hid = jnp.maximum(x_rows @ w1 + b1.reshape(1, -1), 0.0)
    logits = hid @ w2 + b2.reshape(1, -1)
    ev = jnp.maximum(logits, 0.0) + jnp.log1p(jnp.exp(-jnp.abs(logits)))
    return ev.reshape(n, h, w, w2.shape[1]).transpose(0, 3, 1, 2)


if __name__ == "__main__":
    # Small deterministic setup: batch=2, in-channels=4, spatial=16x16,
    # hidden=32, num_classes=5.
    NUM_CLASSES = 5
    N, C, H, W = 2, 4, 16, 16
    HIDDEN = 32

    key = jax.random.PRNGKey(0)
    k_x, k_w1, k_b1, k_w2, k_b2 = jax.random.split(key, 5)

    x = jax.random.normal(k_x, (N, C, H, W), dtype=jnp.float32)

    # Deterministic synthetic parameters (stand-in for the SMP encoder/decoder weights).
    w1 = jax.random.normal(k_w1, (C, HIDDEN), dtype=jnp.float32) * 0.2
    b1 = jax.random.normal(k_b1, (1, HIDDEN), dtype=jnp.float32) * 0.05
    w2 = jax.random.normal(k_w2, (HIDDEN, NUM_CLASSES), dtype=jnp.float32) * 0.2
    b2 = jax.random.normal(k_b2, (1, NUM_CLASSES), dtype=jnp.float32) * 0.05
    params = (w1, b1, w2, b2)

    evidence = edl_classifier_forward(x, params)
    evidence = jax.block_until_ready(evidence)

    # Sanity checks: shape/dtype and numerics vs pure-JAX reference.
    assert evidence.shape == (N, NUM_CLASSES, H, W), evidence.shape
    assert evidence.dtype == jnp.float32
    assert bool(jnp.all(evidence >= 0.0))  # softplus evidence is non-negative
    ref = _reference_forward(x, params)
    assert bool(jnp.allclose(evidence, ref, atol=1e-5, rtol=1e-5))

    print("KERNEL_OK")
</pallas_src>

<mosaic_0001>
module attributes {stable_mosaic.version = 11 : i64} {
  func.func @edl_forward_kernel(%arg0: i32, %arg1: i32, %arg2: memref<1x4x256xf32, #tpu.memory_space<vmem>>, %arg3: memref<32x4xf32, #tpu.memory_space<vmem>>, %arg4: memref<32x1xf32, #tpu.memory_space<vmem>>, %arg5: memref<5x32xf32, #tpu.memory_space<vmem>>, %arg6: memref<5x1xf32, #tpu.memory_space<vmem>>, %arg7: memref<1x5x256xf32, #tpu.memory_space<vmem>>) attributes {dimension_semantics = [#tpu.dimension_semantics<parallel>, #tpu.dimension_semantics<parallel>], iteration_bounds = array<i64: 2, 1>, scalar_prefetch = 0 : i64, scratch_operands = 0 : i64, tpu.core_type = #tpu.core_type<tc>, window_params = [{transform_indices = @transform_0, window_bounds = array<i64: 1, 4, 256>}, {pipeline_mode = #tpu.pipeline_mode<synchronous>, transform_indices = @transform_1, window_bounds = array<i64: 32, 4>}, {pipeline_mode = #tpu.pipeline_mode<synchronous>, transform_indices = @transform_2, window_bounds = array<i64: 32, 1>}, {pipeline_mode = #tpu.pipeline_mode<synchronous>, transform_indices = @transform_3, window_bounds = array<i64: 5, 32>}, {pipeline_mode = #tpu.pipeline_mode<synchronous>, transform_indices = @transform_4, window_bounds = array<i64: 5, 1>}, {transform_indices = @transform_5, window_bounds = array<i64: 1, 5, 256>}]} {
    %c0 = arith.constant 0 : index
    %c0_0 = arith.constant 0 : index
    %0 = vector.load %arg3[%c0, %c0_0] : memref<32x4xf32, #tpu.memory_space<vmem>>, vector<32x4xf32>
    %c0_1 = arith.constant 0 : index
    %c0_2 = arith.constant 0 : index
    %c0_3 = arith.constant 0 : index
    %1 = vector.load %arg2[%c0_1, %c0_2, %c0_3] : memref<1x4x256xf32, #tpu.memory_space<vmem>>, vector<1x4x256xf32>
    %2 = vector.shape_cast %1 : vector<1x4x256xf32> to vector<4x256xf32>
    %cst = arith.constant dense<0.000000e+00> : vector<32x256xf32>
    %3 = tpu.matmul %0, %2, %cst {dimension_numbers = #tpu.dot_dimension_numbers<[1], [0], [0], [1], [0, 0, 1, 1], [], []>} : vector<32x4xf32>, vector<4x256xf32>, vector<32x256xf32> -> vector<32x256xf32>
    %c0_4 = arith.constant 0 : index
    %c0_5 = arith.constant 0 : index
    %4 = vector.load %arg4[%c0_4, %c0_5] : memref<32x1xf32, #tpu.memory_space<vmem>>, vector<32x1xf32>
    %5 = vector.broadcast %4 : vector<32x1xf32> to vector<32x256xf32>
    %6 = arith.addf %3, %5 : vector<32x256xf32>
    %cst_6 = arith.constant 0.000000e+00 : f32
    %7 = vector.broadcast %cst_6 : f32 to vector<32x256xf32>
    %8 = arith.maximumf %6, %7 : vector<32x256xf32>
    %c0_7 = arith.constant 0 : index
    %c0_8 = arith.constant 0 : index
    %9 = vector.load %arg5[%c0_7, %c0_8] : memref<5x32xf32, #tpu.memory_space<vmem>>, vector<5x32xf32>
    %cst_9 = arith.constant dense<0.000000e+00> : vector<5x256xf32>
    %10 = tpu.matmul %9, %8, %cst_9 {dimension_numbers = #tpu.dot_dimension_numbers<[1], [0], [0], [1], [0, 0, 1, 1], [], []>} : vector<5x32xf32>, vector<32x256xf32>, vector<5x256xf32> -> vector<5x256xf32>
    %c0_10 = arith.constant 0 : index
    %c0_11 = arith.constant 0 : index
    %11 = vector.load %arg6[%c0_10, %c0_11] : memref<5x1xf32, #tpu.memory_space<vmem>>, vector<5x1xf32>
    %12 = vector.broadcast %11 : vector<5x1xf32> to vector<5x256xf32>
    %13 = arith.addf %10, %12 : vector<5x256xf32>
    %cst_12 = arith.constant 0.000000e+00 : f32
    %14 = vector.broadcast %cst_12 : f32 to vector<5x256xf32>
    %15 = arith.maximumf %13, %14 : vector<5x256xf32>
    %16 = math.absf %13 : vector<5x256xf32>
    %cst_13 = arith.constant 0.000000e+00 : f32
    %17 = vector.broadcast %cst_13 : f32 to vector<5x256xf32>
    %18 = arith.subf %17, %16 : vector<5x256xf32>
    %19 = math.exp %18 : vector<5x256xf32>
    %20 = math.log1p %19 : vector<5x256xf32>
    %21 = arith.addf %15, %20 : vector<5x256xf32>
    %c0_14 = arith.constant 0 : index
    %c0_15 = arith.constant 0 : index
    %c0_16 = arith.constant 0 : index
    %22 = vector.load %arg7[%c0_14, %c0_15, %c0_16] : memref<1x5x256xf32, #tpu.memory_space<vmem>>, vector<1x5x256xf32>
    %23 = vector.shape_cast %22 : vector<1x5x256xf32> to vector<5x256xf32>
    %24 = vector.shape_cast %21 : vector<5x256xf32> to vector<1x5x256xf32>
    tpu.vector_store %arg7[%c0_14, %c0_15, %c0_16], %24 {strides = array<i32>} : memref<1x5x256xf32, #tpu.memory_space<vmem>>, vector<1x5x256xf32>,
    return
  }
  func.func @transform_0(%arg0: i32, %arg1: i32) -> (i32, i32, i32) {
    %c0_i32 = arith.constant 0 : i32
    %c0_i32_0 = arith.constant 0 : i32
    return %arg0, %c0_i32, %arg1 : i32, i32, i32
  }
  func.func @transform_1(%arg0: i32, %arg1: i32) -> (i32, i32) {
    %c0_i32 = arith.constant 0 : i32
    %c0_i32_0 = arith.constant 0 : i32
    %c0_i32_1 = arith.constant 0 : i32
    return %c0_i32, %c0_i32_0 : i32, i32
  }
  func.func @transform_2(%arg0: i32, %arg1: i32) -> (i32, i32) {
    %c0_i32 = arith.constant 0 : i32
    %c0_i32_0 = arith.constant 0 : i32
    %c0_i32_1 = arith.constant 0 : i32
    return %c0_i32, %c0_i32_0 : i32, i32
  }
  func.func @transform_3(%arg0: i32, %arg1: i32) -> (i32, i32) {
    %c0_i32 = arith.constant 0 : i32
    %c0_i32_0 = arith.constant 0 : i32
    %c0_i32_1 = arith.constant 0 : i32
    return %c0_i32, %c0_i32_0 : i32, i32
  }
  func.func @transform_4(%arg0: i32, %arg1: i32) -> (i32, i32) {
    %c0_i32 = arith.constant 0 : i32
    %c0_i32_0 = arith.constant 0 : i32
    %c0_i32_1 = arith.constant 0 : i32
    return %c0_i32, %c0_i32_0 : i32, i32
  }
  func.func @transform_5(%arg0: i32, %arg1: i32) -> (i32, i32, i32) {
    %c0_i32 = arith.constant 0 : i32
    %c0_i32_0 = arith.constant 0 : i32
    return %arg0, %c0_i32, %arg1 : i32, i32, i32
  }
}

</mosaic_0001>

<llo_original>
// kernel: tpu_custom_call.1
$region0: #{tpu_custom_call.1}
  #allocation0 [shape = 'u32[]', space=smem, size = 0x4, offset = 0x4, fixed_abs, tag = 'smem constant byte address 0x4 - core index']
  #allocation1 [shape = 'u32[72,128]{1,0:T(1,128)}', space=vmem, size = 0x9000, scoped, tag = 'internal scratch']
  %s0 = inlined_call_operand.vmem [shape: f32[2,4,256], index: 0, kind: input, shape index: {}]
  %s1 = inlined_call_operand.vmem [shape: f32[32,4], index: 1, kind: input, shape index: {}]
  %s2 = inlined_call_operand.vmem [shape: f32[32,1], index: 2, kind: input, shape index: {}]
  %s3 = inlined_call_operand.vmem [shape: f32[5,32], index: 3, kind: input, shape index: {}]
  %s4 = inlined_call_operand.vmem [shape: f32[5,1], index: 4, kind: input, shape index: {}]
  %s5 = inlined_call_operand.vmem [shape: f32[2,5,256], index: 5, kind: output, shape index: {}]
  %s6 = sld [smem:[#allocation0]]
  $region53: #{tpu_custom_call.1} parent=0
    _
  %s8 = ssub.s32 1, %s6
  %s9 = scalar_select 0, %s8, %s6
  loop: start=0, step=1, limit=4
  $region2: #{tpu_custom_call.1} parent=0 // loop_pre_header
    _
  $region3: #{tpu_custom_call.1} parent=0 // loop_header
    %s11 = sphi 0, %s15
    %p12 = scmp.ge.s32.totalorder %s11, 4
    %s18 = sphi 0, %s30
    %s19 = sphi 0, %s26
    %s20 = sphi 0, %s18
    %s21 = sphi 0, %s19
    %s22 = sphi 0, %s20
    %s23 = sphi 0, %s21
    %s35 = sphi 0, %s37
    %s38 = sphi 0, %s35
    %s39 = sphi 0, %s38
    %s55 = sphi 0, %s39
    %s59 = sphi 0, %s59
    %s61 = sphi 0, %s59
    %s62 = sphi 0, %s61
    %s76 = sphi 0, %s62
    %s80 = sphi 0, %s80
    %s82 = sphi 0, %s80
    %s83 = sphi 0, %s82
    %s97 = sphi 0, %s83
    %s101 = sphi 0, %s101
    %s103 = sphi 0, %s101
    %s104 = sphi 0, %s103
    %s118 = sphi 0, %s104
    %s122 = sphi 0, %s122
    %s124 = sphi 0, %s122
    %s125 = sphi 0, %s124
    %s139 = sphi 0, %s125
    %s147 = sphi 0, %s149
    %s150 = sphi 0, %s147
    %s151 = sphi 0, %s150
    %s167 = sphi 0, %s151
  $region4: #{tpu_custom_call.1} parent=0 // loop_header_branch
    %14 = sbr.rel (%p12) target = $region8
  $region5: #{tpu_custom_call.1} parent=0 // loop_body
    %s16 = ssub.s32 %s11, 1
    %s17 = ssub.s32 %s11, 2
    %s24 = sadd.s32 1, %s19
    %p25 = scmp.ge.s32.totalorder %s24, 1
    %s26 = scalar_select %p25, 0, %s24
    %s27 = sadd.s32 1, %s18
    %s28 = scalar_select %p25, %s27, %s18
    %p29 = scmp.ge.s32.totalorder %s28, 2
    %s30 = scalar_select %p29, 0, %s28
    %s31 = ssub.s32 %s18, %s30
    %s32 = ssub.s32 %s19, %s26
    %s33 = sor.u32 %s31, %s32
    %p34 = scmp.eq.s32.totalorder %s33, 0
    %s36 = sadd.s32 %s35, 1
    %s37 = scalar_select %p34, %s35, %s36
    %p40 = pneg %p34
    %p41 = scmp.eq.s32.totalorder %s11, 1
    %p42 = por %p40, %p41
    %p43 = scmp.ne.s32.totalorder %s35, %s38
    %p44 = scmp.eq.s32.totalorder %s11, 0
    %p45 = por %p43, %p44
    %p46 = scmp.ne.s32.totalorder %s35, %s38
    %p47 = scmp.eq.s32.totalorder %s16, 1
    %p48 = por %p46, %p47
    %p49 = scmp.ne.s32.totalorder %s38, %s39
    %p50 = scmp.eq.s32.totalorder %s16, 0
    %p51 = por %p49, %p50
    %p52 = scmp.ne.s32.totalorder %s38, %s39
    %p53 = scmp.eq.s32.totalorder %s17, 1
    %p54 = por %p52, %p53
    %p56 = scmp.ne.s32.totalorder %s39, %s55
    %p57 = scmp.eq.s32.totalorder %s17, 0
    %p58 = por %p56, %p57
    %s60 = sadd.s32 %s59, 1
    %p63 = scmp.eq.s32.totalorder %s11, 1
    %p64 = scmp.ne.s32.totalorder %s59, %s61
    %p65 = scmp.eq.s32.totalorder %s11, 0
    %p66 = por %p64, %p65
    %p67 = scmp.ne.s32.totalorder %s59, %s61
    %p68 = scmp.eq.s32.totalorder %s16, 1
    %p69 = por %p67, %p68
    %p70 = scmp.ne.s32.totalorder %s61, %s62
    %p71 = scmp.eq.s32.totalorder %s16, 0
    %p72 = por %p70, %p71
    %p73 = scmp.ne.s32.totalorder %s61, %s62
    %p74 = scmp.eq.s32.totalorder %s17, 1
    %p75 = por %p73, %p74
    %p77 = scmp.ne.s32.totalorder %s62, %s76
    %p78 = scmp.eq.s32.totalorder %s17, 0
    %p79 = por %p77, %p78
    %s81 = sadd.s32 %s80, 1
    %p84 = scmp.eq.s32.totalorder %s11, 1
    %p85 = scmp.ne.s32.totalorder %s80, %s82
    %p86 = scmp.eq.s32.totalorder %s11, 0
    %p87 = por %p85, %p86
    %p88 = scmp.ne.s32.totalorder %s80, %s82
    %p89 = scmp.eq.s32.totalorder %s16, 1
    %p90 = por %p88, %p89
    %p91 = scmp.ne.s32.totalorder %s82, %s83
    %p92 = scmp.eq.s32.totalorder %s16, 0
    %p93 = por %p91, %p92
    %p94 = scmp.ne.s32.totalorder %s82, %s83
    %p95 = scmp.eq.s32.totalorder %s17, 1
    %p96 = por %p94, %p95
    %p98 = scmp.ne.s32.totalorder %s83, %s97
    %p99 = scmp.eq.s32.totalorder %s17, 0
    %p100 = por %p98, %p99
    %s102 = sadd.s32 %s101, 1
    %p105 = scmp.eq.s32.totalorder %s11, 1
    %p106 = scmp.ne.s32.totalorder %s101, %s103
    %p107 = scmp.eq.s32.totalorder %s11, 0
    %p108 = por %p106, %p107
    %p109 = scmp.ne.s32.totalorder %s101, %s103
    %p110 = scmp.eq.s32.totalorder %s16, 1
    %p111 = por %p109, %p110
    %p112 = scmp.ne.s32.totalorder %s103, %s104
    %p113 = scmp.eq.s32.totalorder %s16, 0
    %p114 = por %p112, %p113
    %p115 = scmp.ne.s32.totalorder %s103, %s104
    %p116 = scmp.eq.s32.totalorder %s17, 1
    %p117 = por %p115, %p116
    %p119 = scmp.ne.s32.totalorder %s104, %s118
    %p120 = scmp.eq.s32.totalorder %s17, 0
    %p121 = por %p119, %p120
    %s123 = sadd.s32 %s122, 1
    %p126 = scmp.eq.s32.totalorder %s11, 1
    %p127 = scmp.ne.s32.totalorder %s122, %s124
    %p128 = scmp.eq.s32.totalorder %s11, 0
    %p129 = por %p127, %p128
    %p130 = scmp.ne.s32.totalorder %s122, %s124
    %p131 = scmp.eq.s32.totalorder %s16, 1
    %p132 = por %p130, %p131
    %p133 = scmp.ne.s32.totalorder %s124, %s125
    %p134 = scmp.eq.s32.totalorder %s16, 0
    %p135 = por %p133, %p134
    %p136 = scmp.ne.s32.totalorder %s124, %s125
    %p137 = scmp.eq.s32.totalorder %s17, 1
    %p138 = por %p136, %p137
    %p140 = scmp.ne.s32.totalorder %s125, %s139
    %p141 = scmp.eq.s32.totalorder %s17, 0
    %p142 = por %p140, %p141
    %s143 = ssub.s32 %s18, %s30
    %s144 = ssub.s32 %s19, %s26
    %s145 = sor.u32 %s143, %s144
    %p146 = scmp.eq.s32.totalorder %s145, 0
    %s148 = sadd.s32 %s147, 1
    %s149 = scalar_select %p146, %s147, %s148
    %p152 = pneg %p146
    %p153 = scmp.eq.s32.totalorder %s11, 1
    %p154 = por %p152, %p153
    %p155 = scmp.ne.s32.totalorder %s147, %s150
    %p156 = scmp.eq.s32.totalorder %s11, 0
    %p157 = por %p155, %p156
    %p158 = scmp.ne.s32.totalorder %s147, %s150
    %p159 = scmp.eq.s32.totalorder %s16, 1
    %p160 = por %p158, %p159
    %p161 = scmp.ne.s32.totalorder %s150, %s151
    %p162 = scmp.eq.s32.totalorder %s16, 0
    %p163 = por %p161, %p162
    %p164 = scmp.ne.s32.totalorder %s150, %s151
    %p165 = scmp.eq.s32.totalorder %s17, 1
    %p166 = por %p164, %p165
    %p168 = scmp.ne.s32.totalorder %s151, %s167
    %p169 = scmp.eq.s32.totalorder %s17, 0
    %p170 = por %p168, %p169
    %p171 = scmp.le.s32.totalorder 1, %s11
    %p172 = scmp.lt.s32.totalorder %s11, 3
    %p173 = pnand %p171, %p172
    %p174 = pneg %p173
    // Predicated region
    $region9: #{tpu_custom_call.1} parent=5 // pred_check
      _
    $region10: #{tpu_custom_call.1} parent=5 // pred_check_branch
      %176 = sbr.rel (%p173) target = $region12
    $region11: #{tpu_custom_call.1} parent=5 // pred_region
      %s177 = ssub.s32 %s11, 1
      // Predicated region
      $region13: #{tpu_custom_call.1} parent=11 // pred_check
        %p178 = pneg %p72
      $region14: #{tpu_custom_call.1} parent=11 // pred_check_branch
        %180 = sbr.rel (%p178) target = $region16
      $region15: #{tpu_custom_call.1} parent=11 // pred_region
        _
      $region16: #{tpu_custom_call.1} parent=11 // pred_fallthru
        _
      // Predicated region
      $region17: #{tpu_custom_call.1} parent=11 // pred_check
        %p181 = pneg %p93
      $region18: #{tpu_custom_call.1} parent=11 // pred_check_branch
        %183 = sbr.rel (%p181) target = $region20
      $region19: #{tpu_custom_call.1} parent=11 // pred_region
        _
      $region20: #{tpu_custom_call.1} parent=11 // pred_fallthru
        _
      // Predicated region
      $region21: #{tpu_custom_call.1} parent=11 // pred_check
        %p184 = pneg %p114
      $region22: #{tpu_custom_call.1} parent=11 // pred_check_branch
        %186 = sbr.rel (%p184) target = $region24
      $region23: #{tpu_custom_call.1} parent=11 // pred_region
        _
      $region24: #{tpu_custom_call.1} parent=11 // pred_fallthru
        _
      // Predicated region
      $region25: #{tpu_custom_call.1} parent=11 // pred_check
        %p187 = pneg %p135
      $region26: #{tpu_custom_call.1} parent=11 // pred_check_branch
        %189 = sbr.rel (%p187) target = $region28
      $region27: #{tpu_custom_call.1} parent=11 // pred_region
        _
      $region28: #{tpu_custom_call.1} parent=11 // pred_fallthru
        _
    $region12: #{tpu_custom_call.1} parent=5 // pred_fallthru
      _
    %p190 = scmp.lt.s32.totalorder %s11, 2
    // Predicated region
    $region29: #{tpu_custom_call.1} parent=5 // pred_check
      %p191 = pneg %p190
    $region30: #{tpu_custom_call.1} parent=5 // pred_check_branch
      %193 = sbr.rel (%p191) target = $region32
    $region31: #{tpu_custom_call.1} parent=5 // pred_region
      // Predicated region
      $region33: #{tpu_custom_call.1} parent=31 // pred_check
        %p194 = pneg %p45
      $region34: #{tpu_custom_call.1} parent=31 // pred_check_branch
        %196 = sbr.rel (%p194) target = $region36
      $region35: #{tpu_custom_call.1} parent=31 // pred_region
        %s197 = smul.u32 2, %s19
        %p198 = scmp.lt.s32.totalorder %s18, 1
        %s199 = scalar_select %p198, %s18, 1
        %p200 = scmp.lt.s32.totalorder %s197, 1
        %s201 = scalar_select %p200, %s197, 1
        %s202 = smul.addr %s199, 2
        %s203 = sadd.s32 %s201, %s202
        %s204 = smul.addr %s203, 4
        %s205 = scalar_lea.vmem %s0, %s204
        %s206 = smul.u32 2, %s19
      $region36: #{tpu_custom_call.1} parent=31 // pred_fallthru
        _
    $region32: #{tpu_custom_call.1} parent=5 // pred_fallthru
      _
    %p207 = scmp.le.s32.totalorder 1, %s11
    %p208 = scmp.lt.s32.totalorder %s11, 3
    %p209 = pnand %p207, %p208
    %p210 = pneg %p209
    // Predicated region
    $region37: #{tpu_custom_call.1} parent=5 // pred_check
      _
    $region38: #{tpu_custom_call.1} parent=5 // pred_check_branch
      %212 = sbr.rel (%p209) target = $region40
    $region39: #{tpu_custom_call.1} parent=5 // pred_region
      %s213 = ssub.s32 %s11, 1
      %s214 = smul.u32 2, %s21
      %p215 = scmp.lt.s32.totalorder %s20, 1
      %s216 = scalar_select %p215, %s20, 1
      %p217 = scmp.lt.s32.totalorder %s214, 1
      %s218 = scalar_select %p217, %s214, 1
      %s219 = smul.addr %s216, 2
      %s220 = sadd.s32 %s218, %s219
      %s221 = smul.addr %s220, 4
      %s222 = scalar_lea.vmem %s0, %s221
      %p223 = pneg %p51
      %p224 = pneg %p48
      %p225 = pneg %p72
      %p226 = pneg %p69
      %p227 = pneg %p93
      %p228 = pneg %p90
      %p229 = pneg %p114
      %p230 = pneg %p111
      %p231 = pneg %p135
      %p232 = pneg %p132
      %p233 = pneg %p163
      %p234 = pneg %p160
      %s235 = smul.u32 2, %s21
      %p236 = scmp.lt.s32.totalorder %s20, 1
      %s237 = scalar_select %p236, %s20, 1
      %p238 = scmp.lt.s32.totalorder %s235, 1
      %s239 = scalar_select %p238, %s235, 1
      %s240 = smul.addr %s237, 2
      %s241 = sadd.s32 %s239, %s240
      %s242 = smul.addr %s241, 8
      %s243 = scalar_lea.vmem %s5, %s242
      %s244 = smul.u32 2, %s21
      %p245 = scmp.lt.s32.totalorder %s20, 1
      %s246 = scalar_select %p245, %s20, 1
      %p247 = scmp.lt.s32.totalorder %s244, 1
      %s248 = scalar_select %p247, %s244, 1
      %s249 = smul.addr %s246, 2
      %s250 = sadd.s32 %s248, %s249
      %s251 = smul.addr %s250, 4
      %s252 = scalar_lea.vmem %s0, %s251
      %s253 = smul.u32 2, %s21
      %s254 = smul.u32 2, %s21
      %p255 = scmp.lt.s32.totalorder %s20, 1
      %s256 = scalar_select %p255, %s20, 1
      %p257 = scmp.lt.s32.totalorder %s254, 1
      %s258 = scalar_select %p257, %s254, 1
      %s259 = smul.addr %s256, 2
      %s260 = sadd.s32 %s258, %s259
      %s261 = smul.addr %s260, 8
      %s262 = scalar_lea.vmem %s5, %s261
      %s263 = smul.u32 2, %s21
      %v264 = vld [vmem:[%s1] sm:$0xff]
      %v265 = vld [vmem:[%s1 + $0x8] sm:$0xff]
      %v266 = vld [vmem:[%s1 + $0x10] sm:$0xff]
      %v267 = vld [vmem:[%s1 + $0x18] sm:$0xff]
      %v268 = vld [vmem:[%s252] sm:$0xff]
      %v269 = vld [vmem:[%s2] sm:$0xff]
      %v270 = vld [vmem:[%s2 + $0x8] sm:$0xff]
      %v271 = vld [vmem:[%s2 + $0x10] sm:$0xff]
      %v272 = vld [vmem:[%s2 + $0x18] sm:$0xff]
      %274 = vset.pattern.permute.xlu0 0
      %275 = vperm.xlu0 %274, %v269
      %v276 = vpop.permute.xlu0 %275
      %279 = vset.pattern.permute.xlu0 0
      %280 = vperm.xlu0 %279, %v270
      %v281 = vpop.permute.xlu0 %280
      %284 = vset.pattern.permute.xlu0 0
      %285 = vperm.xlu0 %284, %v271
      %v286 = vpop.permute.xlu0 %285
      %289 = vset.pattern.permute.xlu0 0
      %290 = vperm.xlu0 %289, %v272
      %v291 = vpop.permute.xlu0 %290
      %294 = vst [vmem:[#allocation1] ss:$2 sm:$0xff] %v268
      %v295 = vld.sshfl [vmem:[#allocation1] sm:$0xff pattern:$0x75316420]
      %v296 = vld.sshfl [vmem:[#allocation1 + $0x8] sm:$0xff pattern:$0x75316420]
      %vm297 = vcmask 31744
      %v299 = vsel %vm297, %v264, 0
      %v302 = vsel %vm297, %v265, 0
      %v305 = vsel %vm297, %v266, 0
      %v308 = vsel %vm297, %v267, 0
      %vm310 = vcmask 1043456
      %v311 = vsel %vm310, %v295, 0
      %v313 = vsel %vm310, %v296, 0
      %315 = vmatpush.msra.mxu0 0.0
      %316 = vmatpush.msra.mxu0 0.0
      %317 = vmatpush.msra.mxu0 0.0
      %318 = vmatpush.msra.mxu0 0.0
      %319 = vmatpush.msra.mxu0 0.0
      %320 = vmatpush.msra.mxu0 0.0
      %321 = vmatpush.msra.mxu0 0.0
      %322 = vmatpush.msra.mxu0 0.0
      %323 = vmatpush.msra.mxu0 0.0
      %324 = vmatpush.msra.mxu0 0.0
      %325 = vmatpush.msra.mxu0 0.0
      %326 = vmatpush.msra.mxu0 0.0
      %327 = vmatpush.msra.mxu0 0.0
      %328 = vmatpush.msra.mxu0 0.0
      %329 = vmatpush.msra.mxu0 0.0
      %330 = vmatpush.msra.mxu0 %v311
      %331 = vmatmul.f32.gmra.mxu0 %v299
      %v332 = vpop.f32.mrf.mxu0
      %v333 = vadd.f32 %v276, %v332
      %334 = vmatmul.f32.gmra.mxu0 %v302
      %v335 = vpop.f32.mrf.mxu0
      %v336 = vadd.f32 %v281, %v335
      %337 = vmatmul.f32.gmra.mxu0 %v305
      %v338 = vpop.f32.mrf.mxu0
      %v339 = vadd.f32 %v286, %v338
      %340 = vmatmul.f32.gmra.mxu0 %v308
      %v341 = vpop.f32.mrf.mxu0
      %v342 = vadd.f32 %v291, %v341
      %343 = vdwg.mxu0
      %344 = vmatpush.msra.mxu0 0.0
      %345 = vmatpush.msra.mxu0 0.0
      %346 = vmatpush.msra.mxu0 0.0
      %347 = vmatpush.msra.mxu0 0.0
      %348 = vmatpush.msra.mxu0 0.0
      %349 = vmatpush.msra.mxu0 0.0
      %350 = vmatpush.msra.mxu0 0.0
      %351 = vmatpush.msra.mxu0 0.0
      %352 = vmatpush.msra.mxu0 0.0
      %353 = vmatpush.msra.mxu0 0.0
      %354 = vmatpush.msra.mxu0 0.0
      %355 = vmatpush.msra.mxu0 0.0
      %356 = vmatpush.msra.mxu0 0.0
      %357 = vmatpush.msra.mxu0 0.0
      %358 = vmatpush.msra.mxu0 0.0
      %359 = vmatpush.msra.mxu0 %v313
      %360 = vmatmul.f32.gmra.mxu0 %v299
      %v361 = vpop.f32.mrf.mxu0
      %v362 = vadd.f32 %v276, %v361
      %363 = vmatmul.f32.gmra.mxu0 %v302
      %v364 = vpop.f32.mrf.mxu0
      %v365 = vadd.f32 %v281, %v364
      %366 = vmatmul.f32.gmra.mxu0 %v305
      %v367 = vpop.f32.mrf.mxu0
      %v368 = vadd.f32 %v286, %v367
      %369 = vmatmul.f32.gmra.mxu0 %v308
      %v370 = vpop.f32.mrf.mxu0
      %v371 = vadd.f32 %v291, %v370
      %372 = vdwg.mxu0
      %v373 = vmax.f32 %v333, 0.0
      %v374 = vmax.f32 %v362, 0.0
      %v375 = vmax.f32 %v336, 0.0
      %v376 = vmax.f32 %v365, 0.0
      %v377 = vmax.f32 %v339, 0.0
      %v378 = vmax.f32 %v368, 0.0
      %v379 = vmax.f32 %v342, 0.0
      %v380 = vmax.f32 %v371, 0.0
      %v381 = vld [vmem:[%s3] sm:$0x1f]
      %v382 = vld [vmem:[%s4] sm:$0x1f]
      %384 = vset.pattern.permute.xlu0 0
      %385 = vperm.xlu0 %384, %v382
      %v386 = vpop.permute.xlu0 %385
      %vm388 = vcmask 261120
      %v390 = vsel %vm388, %v381, 0
      %392 = vmatpush.msra.mxu0 0.0
      %393 = vmatpush.msra.mxu0 0.0
      %394 = vmatpush.msra.mxu0 0.0
      %395 = vmatpush.msra.mxu0 0.0
      %396 = vmatpush.msra.mxu0 0.0
      %397 = vmatpush.msra.mxu0 0.0
      %398 = vmatpush.msra.mxu0 0.0
      %399 = vmatpush.msra.mxu0 0.0
      %400 = vmatpush.msra.mxu0 0.0
      %401 = vmatpush.msra.mxu0 0.0
      %402 = vmatpush.msra.mxu0 0.0
      %403 = vmatpush.msra.mxu0 0.0
      %404 = vmatpush.msra.mxu0 %v379
      %405 = vmatpush.msra.mxu0 %v377
      %406 = vmatpush.msra.mxu0 %v375
      %407 = vmatpush.msra.mxu0 %v373
      %408 = vmatmul.f32.gmra.mxu0 %v390
      %v409 = vpop.f32.mrf.mxu0
      %v410 = vadd.f32 %v386, %v409
      %411 = vdwg.mxu0
      %412 = vmatpush.msra.mxu0 0.0
      %413 = vmatpush.msra.mxu0 0.0
      %414 = vmatpush.msra.mxu0 0.0
      %415 = vmatpush.msra.mxu0 0.0
      %416 = vmatpush.msra.mxu0 0.0
      %417 = vmatpush.msra.mxu0 0.0
      %418 = vmatpush.msra.mxu0 0.0
      %419 = vmatpush.msra.mxu0 0.0
      %420 = vmatpush.msra.mxu0 0.0
      %421 = vmatpush.msra.mxu0 0.0
      %422 = vmatpush.msra.mxu0 0.0
      %423 = vmatpush.msra.mxu0 0.0
      %424 = vmatpush.msra.mxu0 %v380
      %425 = vmatpush.msra.mxu0 %v378
      %426 = vmatpush.msra.mxu0 %v376
      %427 = vmatpush.msra.mxu0 %v374
      %428 = vmatmul.f32.gmra.mxu0 %v390
      %v429 = vpop.f32.mrf.mxu0
      %v430 = vadd.f32 %v386, %v429
      %431 = vdwg.mxu0
      %v432 = vmax.f32 %v410, 0.0
      %v433 = vmax.f32 %v430, 0.0
      %v434 = vand.u32 2147483647, %v410
      %v435 = vand.u32 2147483647, %v430
      %v436 = vsub.f32 0.0, %v434
      %v437 = vsub.f32 0.0, %v435
      %v438 = vmul.f32 %v436, 1.442695
      %v439 = vpow.pop %v438
      %v440 = vmul.f32 %v437, 1.442695
      %v441 = vpow.pop %v440
      %v442 = vadd.f32 %v439, 1.0
      %v443 = vlog2.pop %v442
      %v444 = vmul.f32 %v443, 0.6931472
      %v445 = vmul.f32 -0.5, %v439
      %v446 = vadd.f32 %v445, 1.0
      %v447 = vmul.f32 %v446, %v439
      %v448 = vand.u32 2147483647, %v439
      %vm449 = vcmp.lt.f32.partialorder %v448, 0.0004427343
      %v450 = vsel %vm449, %v447, %v444
      %v451 = vadd.f32 %v441, 1.0
      %v452 = vlog2.pop %v451
      %v453 = vmul.f32 %v452, 0.6931472
      %v454 = vmul.f32 -0.5, %v441
      %v455 = vadd.f32 %v454, 1.0
      %v456 = vmul.f32 %v455, %v441
      %v457 = vand.u32 2147483647, %v441
      %vm458 = vcmp.lt.f32.partialorder %v457, 0.0004427343
      %v459 = vsel %vm458, %v456, %v453
      %v460 = vadd.f32 %v432, %v450
      %v461 = vadd.f32 %v433, %v459
      %462 = vst [vmem:[%s262] sm:$0x1f] %v460
      %463 = vst [vmem:[%s262 + $0x8] sm:$0x1f] %v461
      %s464 = smul.u32 2, %s21
      %p465 = scmp.lt.s32.totalorder %s20, 1
      %s466 = scalar_select %p465, %s20, 1
      %p467 = scmp.lt.s32.totalorder %s464, 1
      %s468 = scalar_select %p467, %s464, 1
      %s469 = smul.addr %s466, 2
      %s470 = sadd.s32 %s468, %s469
      %s471 = smul.addr %s470, 8
      %s472 = scalar_lea.vmem %s5, %s471
      // Predicated region
      $region41: #{tpu_custom_call.1} parent=39 // pred_check
        %p473 = pneg %p160
      $region42: #{tpu_custom_call.1} parent=39 // pred_check_branch
        %475 = sbr.rel (%p473) target = $region44
      $region43: #{tpu_custom_call.1} parent=39 // pred_region
        %s476 = smul.u32 2, %s21
      $region44: #{tpu_custom_call.1} parent=39 // pred_fallthru
        _
    $region40: #{tpu_custom_call.1} parent=5 // pred_fallthru
      _
    %p477 = scmp.le.s32.totalorder 2, %s11
    // Predicated region
    $region45: #{tpu_custom_call.1} parent=5 // pred_check
      %p478 = pneg %p477
    $region46: #{tpu_custom_call.1} parent=5 // pred_check_branch
      %480 = sbr.rel (%p478) target = $region48
    $region47: #{tpu_custom_call.1} parent=5 // pred_region
      %s481 = ssub.s32 %s11, 2
      // Predicated region
      $region49: #{tpu_custom_call.1} parent=47 // pred_check
        %p482 = pneg %p166
      $region50: #{tpu_custom_call.1} parent=47 // pred_check_branch
        %484 = sbr.rel (%p482) target = $region52
      $region51: #{tpu_custom_call.1} parent=47 // pred_region
        %s485 = smul.u32 2, %s23
        %p486 = scmp.lt.s32.totalorder %s22, 1
        %s487 = scalar_select %p486, %s22, 1
        %p488 = scmp.lt.s32.totalorder %s485, 1
        %s489 = scalar_select %p488, %s485, 1
        %s490 = smul.addr %s487, 2
        %s491 = sadd.s32 %s489, %s490
        %s492 = smul.addr %s491, 8
        %s493 = scalar_lea.vmem %s5, %s492
      $region52: #{tpu_custom_call.1} parent=47 // pred_fallthru
        _
    $region48: #{tpu_custom_call.1} parent=5 // pred_fallthru
      _
  $region6: #{tpu_custom_call.1} parent=0 // loop_footer
    %s15 = sadd.s32 1, %s11
  $region7: #{tpu_custom_call.1} parent=0 // loop_footer_branch
    %10 = sbr.rel target = $region3
  $region8: #{tpu_custom_call.1} parent=0 // loop_exit
    _

</llo_original>
